<compile_context>
chip_gen: v7x
topology: tpu7x:2x2x1
jax: 0.10.0
libtpu: 0.0.40
codegen_flags: <defaults>
</compile_context>

<pallas_src>
import functools

import jax
import jax.numpy as jnp
from jax import lax
from jax.experimental import pallas as pl
from jax.experimental.pallas import tpu as pltpu


def _round_up(x, m):
    return ((x + m - 1) // m) * m


def _zrow_kernel(x_row_ref, x_colT_ref, n_row_ref, n_col_ref, scal_ref,
                 z_ref, *, exp_dtype):
    """Accumulates Z_i = sum_j exp(-gamma * ||x_i - x_j||^2) for one row stripe."""
    # The (TM, 1) output block is resident across the column ("arbitrary") grid
    # axis; initialise it on the first column step and accumulate directly.
    @pl.when(pl.program_id(1) == 0)
    def _():
        z_ref[...] = jnp.zeros_like(z_ref)

    gamma = scal_ref[0]

    # Gram tile in NN orientation against the pre-transposed (D, TN) operand;
    # MXU with f32 accumulation (no per-step transpose of the column block).
    gram = lax.dot_general(
        x_row_ref[...], x_colT_ref[...],
        dimension_numbers=(((1,), (0,)), ((), ())),
        preferred_element_type=jnp.float32)                           # (TM, TN)

    # ||x_i - x_j||^2 from precomputed f32 squared norms.  Padded columns carry
    # n_col = +inf, so their Gaussian weight is exactly 0.
    sqd = jnp.maximum(n_row_ref[...] + n_col_ref[...] - 2.0 * gram, 0.0)

    # Gaussian kernel: exp in bf16 on v6e/v7x (bf16 EUP path), f32 on v5e; the
    # row-sum always accumulates in f32.
    q = jnp.exp((-gamma * sqd).astype(exp_dtype))
    z_ref[...] += jnp.sum(q.astype(jnp.float32), axis=1, keepdims=True)


def _tile_vmem_bytes(tm, tn, D, itemsize):
    # Double-buffered pipelined inputs + resident f32 (TM, TN) temporaries
    # (gram / sqd / exponent / q) + the resident (TM, 1) accumulator block.
    return (2 * tm * D * itemsize          # row-stripe feats (double-buffered)
            + 2 * D * tn * itemsize        # column-tile feats (pre-transposed)
            + 2 * (tm + tn) * 4            # squared-norm vectors
            + 2 * tm * 4                   # Z_i output block
            + 4 * tm * tn * 4)             # f32 temporaries


def _select_tiles(M, D, itemsize, vmem_cap):
    """VMEM-budget-derived (TM, TN, M_pad); TM | TN | M_pad always holds."""
    budget = int(0.8 * vmem_cap) - (4 << 20)
    if M <= 256:
        # Small problems: a single block, padded only to sublane alignment.
        t = _round_up(max(M, 8), 8)
        return t, t, t
    tm, tn = 8, 128                                          # guaranteed fallback
    for cand_tm, cand_tn in ((512, 1024), (512, 512), (256, 512), (256, 256),
                             (128, 256), (128, 128), (64, 128), (8, 128)):
        if _tile_vmem_bytes(cand_tm, cand_tn, D, itemsize) <= budget:
            tm, tn = cand_tm, cand_tn
            break
    # Avoid excessive column padding for awkward M while keeping TM | TN.
    while tn > 128 and _round_up(M, tn) - M > max(M // 8, 128):
        tn //= 2
    tm = min(tm, tn)
    return tm, tn, _round_up(M, tn)


def _q_row_sums(feats, norms, gamma, *, mxu_dtype, exp_dtype):
    """Z_i = sum_j exp(-gamma * ||x_i - x_j||^2) for i = 0..M-1 via Pallas."""
    M, D = feats.shape
    itemsize = jnp.dtype(mxu_dtype).itemsize

    try:
        vmem_cap = pltpu.get_tpu_info().vmem_capacity_bytes
    except Exception:  # conservative fallback (v7x-sized)
        vmem_cap = 64 << 20
    tm, tn, m_pad = _select_tiles(M, D, itemsize, vmem_cap)

    x = feats.astype(mxu_dtype)
    n_row = norms[:, None].astype(jnp.float32)               # (M, 1)
    n_col = norms[None, :].astype(jnp.float32)               # (1, M)
    if m_pad > M:
        pad = m_pad - M
        x = jnp.pad(x, ((0, pad), (0, 0)))
        n_row = jnp.pad(n_row, ((0, pad), (0, 0)))
        # +inf norm on padded columns -> exp(-inf) == 0 -> no contribution to Z_i.
        n_col = jnp.pad(n_col, ((0, 0), (0, pad)), constant_values=jnp.inf)
    x_colT = x.T                                             # (D, M_pad), lane-dense along M

    scal = jnp.reshape(jnp.asarray(gamma, jnp.float32), (1,))

    est = _tile_vmem_bytes(tm, tn, D, itemsize) + (4 << 20)
    # Never clamp below our own estimate (tiles were already chosen to fit).
    vmem_limit = int(min(vmem_cap, max(est, 32 << 20)))

    n_row_tiles = m_pad // tm
    cost = pl.CostEstimate(
        flops=2 * m_pad * m_pad * D,
        transcendentals=m_pad * m_pad,
        bytes_accessed=(n_row_tiles * m_pad * D * itemsize    # column feats re-read per stripe
                        + m_pad * D * itemsize                # row feats
                        + 3 * m_pad * 4))                     # norms + Z_i

    z = pl.pallas_call(
        functools.partial(_zrow_kernel, exp_dtype=exp_dtype),
        out_shape=jax.ShapeDtypeStruct((m_pad, 1), jnp.float32),
        grid=(m_pad // tm, m_pad // tn),
        in_specs=[
            pl.BlockSpec((tm, D), lambda i, j: (i, 0)),       # row stripe of feats
            pl.BlockSpec((D, tn), lambda i, j: (0, j)),       # column tile (pre-transposed)
            pl.BlockSpec((tm, 1), lambda i, j: (i, 0)),       # ||x_i||^2
            pl.BlockSpec((1, tn), lambda i, j: (0, j)),       # ||x_j||^2 (+inf on padding)
            pl.BlockSpec(memory_space=pltpu.MemorySpace.SMEM),  # [gamma]
        ],
        out_specs=pl.BlockSpec((tm, 1), lambda i, j: (i, 0)),
        compiler_params=pltpu.CompilerParams(
            dimension_semantics=("parallel", "arbitrary"),
            vmem_limit_bytes=vmem_limit,
        ),
        cost_estimate=cost,
    )(x, x_colT, n_row, n_col, scal)
    return z[:M, 0]


def _default_exp_dtype():
    """bf16 exp on v6e/v7x (bf16 EUP); f32 on v5e and older generations."""
    try:
        kind = jax.devices()[0].device_kind.lower()
    except Exception:
        return jnp.float32
    if any(v in kind for v in ("v2", "v3", "v4", "v5")):
        return jnp.float32
    return jnp.bfloat16


def gaussian_loss_forward(state, feats, gamma, *, mxu_dtype=jnp.bfloat16,
                          exp_dtype=None):
    """Functional equivalent of GaussianLoss.forward + its update_s side effects.

    Returns (loss, new_state); `state` mirrors the registered buffers.  As in the
    PyTorch module, broadcasting Z_i (2B, 1) with Z_hat (N, 1) requires N == 2B
    (enforced below).  torch's qii is 1-D, so `-qii / Z` is the rank-1 outer
    product loss[i, j] = -qii[j] / Z[i]; it is formed outside the Pallas kernel
    with an exact f32 divide.  mxu_dtype=bf16 doubles MXU throughput / halves
    feats DMA (diagonal q_ii deviates from 1 at bf16 precision); pass
    mxu_dtype=jnp.float32 for bit-close parity with the torch reference.
    """
    M, D = feats.shape
    B = M // 2
    if exp_dtype is None:
        exp_dtype = _default_exp_dtype()

    N = state["N"][0]
    omega = state["omega"][0]
    rho = state["rho"][0]
    alpha = state["alpha"][0]
    s_inv = state["s_inv"]

    if s_inv.shape[0] != M:
        raise ValueError(
            "GaussianLoss requires N == 2B for the (2B,1)/(N,1) Z broadcast "
            f"(got N={s_inv.shape[0]}, 2B={M}).")

    gamma = jnp.asarray(gamma, jnp.float32)
    x32 = feats.astype(jnp.float32)

    # O(M*D) prep in plain JAX (f32): squared norms and the positive pairs
    # qii[i] = q[i, (i+B) % M] = exp(-gamma * ||x_i - x_{(i+B)%M}||^2).
    norms = jnp.sum(x32 * x32, axis=1)                                # (M,)
    x_pos = jnp.roll(x32, shift=-B, axis=0)                           # row i -> x[(i+B)%M]
    qii = jnp.exp(-gamma * jnp.sum((x32 - x_pos) ** 2, axis=1))       # (M,)

    # O(M^2 D) hot path: per-row partition sums Z_i (the diagonal q_ii stays in
    # the sum, exactly as in torch where masked_fill is not in-place).
    z_i = _q_row_sums(feats, norms, gamma,
                      mxu_dtype=mxu_dtype, exp_dtype=exp_dtype)       # (M,)

    # no_grad block of the reference: momentum / Z_hat / blended Z.
    momentum_fwd = jnp.where(rho < 0, N / (N + omega), rho)
    z_hat = s_inv.astype(jnp.float32) / N * (2 * B - 1)               # (M,)
    z = (1.0 - momentum_fwd) * z_i + momentum_fwd * z_hat             # (M,)

    # Rank-1 loss: loss[i, j] = -qii[j] / Z[i].  Exact divide; trivial XLA
    # broadcast — the only M^2 HBM traffic left, outside the kernel.
    loss = (-qii)[None, :] / z[:, None]                               # (M, M) f32

    # ---- update_s(qii, q): only sum(q) and the row counts are needed from q ----
    sum_q = jnp.sum(z_i)                   # == q.sum() (diagonal included, as in torch)
    Bii = M
    Bij = M
    xi = alpha * jnp.sum(qii) + (1.0 - alpha) * sum_q / (Bij - 1)
    omega_new = alpha * Bii + (1.0 - alpha) * Bij
    momentum_upd = jnp.where(rho < 0, N / (N + omega_new), rho)
    weighted_sum_count = xi / omega_new
    s_inv_new = momentum_upd * s_inv + (1.0 - momentum_upd) * N * weighted_sum_count

    new_state = dict(state)
    new_state["qii"] = jnp.mean(qii)[None]
    new_state["qij"] = (sum_q / (M * M))[None]        # mean(q)
    new_state["qcoeff"] = N / s_inv                   # N**1 / old s_inv (vector, as in torch)
    new_state["xi"] = xi[None]
    new_state["omega"] = omega_new[None]
    new_state["s_inv"] = s_inv_new
    return loss, new_state


if __name__ == "__main__":
    key = jax.random.PRNGKey(0)

    B = 4                    # half-batch -> 2B = 8 samples
    D = 32                   # feature dim
    M = 2 * B
    N_buf = M                # torch broadcast of (2B,1) with (N,1) requires N == 2B
    S_init = 1.0
    alpha = 0.5
    rho = -1.0
    gamma = 2.0              # TODO(synk): self.gamma is never defined in the reference module;
                             #             treated as a hyperparameter here.

    feats = jax.random.normal(key, (M, D), dtype=jnp.float32)

    state = dict(
        xi=jnp.zeros((1,), jnp.float32),
        omega=jnp.zeros((1,), jnp.float32),
        N=jnp.full((1,), float(N_buf), jnp.float32),
        s_inv=jnp.full((N_buf,), float(N_buf) ** S_init, jnp.float32),
        alpha=jnp.full((1,), alpha, jnp.float32),
        rho=jnp.full((1,), rho, jnp.float32),
        qii=jnp.zeros((1,), jnp.float32),
        qij=jnp.zeros((1,), jnp.float32),
        qcoeff=jnp.zeros((1,), jnp.float32),
    )

    # Default (bf16 MXU, generation-dependent exp dtype) forward pass.
    loss, new_state = gaussian_loss_forward(state, feats, gamma)
    jax.block_until_ready(loss)
    jax.block_until_ready(new_state["s_inv"])
    assert loss.shape == (M, M)          # torch broadcasting of -qii / Z gives (2B, 2B)
    assert bool(jnp.all(jnp.isfinite(loss)))

    # Correctness spot-check of the Pallas partition sums on the f32 parity path.
    x32 = feats.astype(jnp.float32)
    norms = jnp.sum(x32 * x32, axis=1)
    z_pallas = _q_row_sums(feats, norms, jnp.asarray(gamma, jnp.float32),
                           mxu_dtype=jnp.float32, exp_dtype=jnp.float32)
    sqd_ref = jnp.sum((x32[:, None, :] - x32[None, :, :]) ** 2, axis=-1)
    z_ref = jnp.sum(jnp.exp(-gamma * sqd_ref), axis=1)
    assert bool(jnp.allclose(z_pallas, z_ref, rtol=1e-4, atol=1e-4))

    print("KERNEL_OK")
</pallas_src>

<mosaic_0001>
module attributes {stable_mosaic.version = 11 : i64} {
  func.func @_zrow_kernel(%arg0: i32, %arg1: i32, %arg2: memref<8x32xbf16, #tpu.memory_space<vmem>>, %arg3: memref<32x8xbf16, #tpu.memory_space<vmem>>, %arg4: memref<8x1xf32, #tpu.memory_space<vmem>>, %arg5: memref<1x8xf32, #tpu.memory_space<vmem>>, %arg6: memref<1xf32, #tpu.memory_space<smem>>, %arg7: memref<8x1xf32, #tpu.memory_space<vmem>>) attributes {dimension_semantics = [#tpu.dimension_semantics<parallel>, #tpu.dimension_semantics<arbitrary>], iteration_bounds = array<i64: 1, 1>, scalar_prefetch = 0 : i64, scratch_operands = 0 : i64, tpu.core_type = #tpu.core_type<tc>, window_params = [{transform_indices = @transform_0, window_bounds = array<i64: 8, 32>}, {transform_indices = @transform_1, window_bounds = array<i64: 32, 8>}, {transform_indices = @transform_2, window_bounds = array<i64: 8, 1>}, {transform_indices = @transform_3, window_bounds = array<i64: 1, 8>}, {transform_indices = @transform_4, window_bounds = array<i64: 1>}, {transform_indices = @transform_5, window_bounds = array<i64: 8, 1>}]} {
    %c0_i32 = arith.constant 0 : i32
    %0 = arith.cmpi eq, %arg1, %c0_i32 : i32
    %1 = arith.extui %0 : i1 to i32
    %c0_i32_0 = arith.constant 0 : i32
    %2 = arith.cmpi ne, %1, %c0_i32_0 : i32
    scf.if %2 {
      %cst_17 = arith.constant 0.000000e+00 : f32
      %28 = vector.broadcast %cst_17 : f32 to vector<8x1xf32>
      %c0_18 = arith.constant 0 : index
      %c0_19 = arith.constant 0 : index
      %29 = vector.load %arg7[%c0_18, %c0_19] : memref<8x1xf32, #tpu.memory_space<vmem>>, vector<8x1xf32>
      tpu.vector_store %arg7[%c0_18, %c0_19], %28 {strides = array<i32>} : memref<8x1xf32, #tpu.memory_space<vmem>>, vector<8x1xf32>,
    } else {
    }
    %c0 = arith.constant 0 : index
    %3 = memref.load %arg6[%c0] : memref<1xf32, #tpu.memory_space<smem>>
    %c0_1 = arith.constant 0 : index
    %c0_2 = arith.constant 0 : index
    %4 = vector.load %arg2[%c0_1, %c0_2] : memref<8x32xbf16, #tpu.memory_space<vmem>>, vector<8x32xbf16>
    %c0_3 = arith.constant 0 : index
    %c0_4 = arith.constant 0 : index
    %5 = vector.load %arg3[%c0_3, %c0_4] : memref<32x8xbf16, #tpu.memory_space<vmem>>, vector<32x8xbf16>
    %cst = arith.constant dense<0.000000e+00> : vector<8x8xf32>
    %6 = tpu.matmul %4, %5, %cst {dimension_numbers = #tpu.dot_dimension_numbers<[1], [0], [0], [1], [0, 0, 1, 1], [], []>} : vector<8x32xbf16>, vector<32x8xbf16>, vector<8x8xf32> -> vector<8x8xf32>
    %c0_5 = arith.constant 0 : index
    %c0_6 = arith.constant 0 : index
    %7 = vector.load %arg4[%c0_5, %c0_6] : memref<8x1xf32, #tpu.memory_space<vmem>>, vector<8x1xf32>
    %c0_7 = arith.constant 0 : index
    %c0_8 = arith.constant 0 : index
    %8 = vector.load %arg5[%c0_7, %c0_8] : memref<1x8xf32, #tpu.memory_space<vmem>>, vector<1x8xf32>
    %9 = vector.broadcast %7 : vector<8x1xf32> to vector<8x8xf32>
    %10 = vector.broadcast %8 : vector<1x8xf32> to vector<8x8xf32>
    %11 = arith.addf %9, %10 : vector<8x8xf32>
    %cst_9 = arith.constant 2.000000e+00 : f32
    %12 = vector.broadcast %cst_9 : f32 to vector<8x8xf32>
    %13 = arith.mulf %12, %6 : vector<8x8xf32>
    %14 = arith.subf %11, %13 : vector<8x8xf32>
    %cst_10 = arith.constant 0.000000e+00 : f32
    %15 = vector.broadcast %cst_10 : f32 to vector<8x8xf32>
    %16 = arith.maximumf %14, %15 : vector<8x8xf32>
    %cst_11 = arith.constant 0.000000e+00 : f32
    %17 = arith.subf %cst_11, %3 : f32
    %18 = vector.broadcast %17 : f32 to vector<8x8xf32>
    %19 = arith.mulf %18, %16 : vector<8x8xf32>
    %20 = arith.truncf %19 : vector<8x8xf32> to vector<8x8xbf16>
    %21 = math.exp %20 : vector<8x8xbf16>
    %c0_12 = arith.constant 0 : index
    %c0_13 = arith.constant 0 : index
    %22 = vector.load %arg7[%c0_12, %c0_13] : memref<8x1xf32, #tpu.memory_space<vmem>>, vector<8x1xf32>
    %23 = arith.extf %21 : vector<8x8xbf16> to vector<8x8xf32>
    %cst_14 = arith.constant dense<0.000000e+00> : vector<8xf32>
    %24 = vector.multi_reduction <add>, %23, %cst_14 [1] : vector<8x8xf32> to vector<8xf32>
    %25 = vector.shape_cast %24 : vector<8xf32> to vector<8x1xf32>
    %26 = arith.addf %22, %25 : vector<8x1xf32>
    %c0_15 = arith.constant 0 : index
    %c0_16 = arith.constant 0 : index
    %27 = vector.load %arg7[%c0_15, %c0_16] : memref<8x1xf32, #tpu.memory_space<vmem>>, vector<8x1xf32>
    tpu.vector_store %arg7[%c0_15, %c0_16], %26 {strides = array<i32>} : memref<8x1xf32, #tpu.memory_space<vmem>>, vector<8x1xf32>,
    return
  }
  func.func @transform_0(%arg0: i32, %arg1: i32) -> (i32, i32) {
    %c0_i32 = arith.constant 0 : i32
    %c0_i32_0 = arith.constant 0 : i32
    return %arg0, %c0_i32 : i32, i32
  }
  func.func @transform_1(%arg0: i32, %arg1: i32) -> (i32, i32) {
    %c0_i32 = arith.constant 0 : i32
    %c0_i32_0 = arith.constant 0 : i32
    return %c0_i32, %arg1 : i32, i32
  }
  func.func @transform_2(%arg0: i32, %arg1: i32) -> (i32, i32) {
    %c0_i32 = arith.constant 0 : i32
    %c0_i32_0 = arith.constant 0 : i32
    return %arg0, %c0_i32 : i32, i32
  }
  func.func @transform_3(%arg0: i32, %arg1: i32) -> (i32, i32) {
    %c0_i32 = arith.constant 0 : i32
    %c0_i32_0 = arith.constant 0 : i32
    return %c0_i32, %arg1 : i32, i32
  }
  func.func @transform_4(%arg0: i32, %arg1: i32) -> i32 {
    %c0_i32 = arith.constant 0 : i32
    %c0_i32_0 = arith.constant 0 : i32
    return %c0_i32 : i32
  }
  func.func @transform_5(%arg0: i32, %arg1: i32) -> (i32, i32) {
    %c0_i32 = arith.constant 0 : i32
    %c0_i32_0 = arith.constant 0 : i32
    return %arg0, %c0_i32 : i32, i32
  }
}

</mosaic_0001>

<llo_original>
// kernel: tpu_custom_call.1
$region0: #{tpu_custom_call.1}
  #allocation0 [shape = 'u32[]', space=smem, size = 0x4, offset = 0x4, fixed_abs, tag = 'smem constant byte address 0x4 - core index']
  #allocation1 [shape = 'u32[144,128]{1,0:T(1,128)}', space=vmem, size = 0x12000, scoped, tag = 'internal scratch']
  #allocation2 [shape = 'f32[1]{0:T(128)S(6)}', space=smem, size = 0x200, scoped, tag = 'scoped memory for tpu_custom_call.1']
  %s0 = inlined_call_operand.vmem [shape: bf16[8,32], index: 0, kind: input, shape index: {}]
  %s1 = inlined_call_operand.vmem [shape: bf16[32,8], index: 1, kind: input, shape index: {}]
  %s2 = inlined_call_operand.vmem [shape: f32[8,1], index: 2, kind: input, shape index: {}]
  %s3 = inlined_call_operand.vmem [shape: f32[1,8], index: 3, kind: input, shape index: {}]
  %s4 = inlined_call_operand.<no memory space> [shape: f32[1], index: 4, kind: input, shape index: {}]
  %s5 = inlined_call_operand.vmem [shape: f32[8,1], index: 5, kind: output, shape index: {}]
  %s6 = sld [smem:[#allocation0]]
  $region34: #{tpu_custom_call.1} parent=0
    _
  %s8 = ssub.s32 1, %s6
  %s9 = scalar_select 0, %s8, %s6
  %10 = sst [smem:[#allocation2]] %s4
  // Predicated region
  $region2: #{tpu_custom_call.1} parent=0 // pred_check
    _
  $region3: #{tpu_custom_call.1} parent=0 // pred_check_branch
    %12 = sbr.rel (0) target = $region5
  $region4: #{tpu_custom_call.1} parent=0 // pred_region
    _
  $region5: #{tpu_custom_call.1} parent=0 // pred_fallthru
    _
  // Predicated region
  $region6: #{tpu_custom_call.1} parent=0 // pred_check
    _
  $region7: #{tpu_custom_call.1} parent=0 // pred_check_branch
    %14 = sbr.rel (0) target = $region9
  $region8: #{tpu_custom_call.1} parent=0 // pred_region
    _
  $region9: #{tpu_custom_call.1} parent=0 // pred_fallthru
    _
  // Predicated region
  $region10: #{tpu_custom_call.1} parent=0 // pred_check
    _
  $region11: #{tpu_custom_call.1} parent=0 // pred_check_branch
    %16 = sbr.rel (0) target = $region13
  $region12: #{tpu_custom_call.1} parent=0 // pred_region
    _
  $region13: #{tpu_custom_call.1} parent=0 // pred_fallthru
    _
  // Predicated region
  $region14: #{tpu_custom_call.1} parent=0 // pred_check
    _
  $region15: #{tpu_custom_call.1} parent=0 // pred_check_branch
    %18 = sbr.rel (0) target = $region17
  $region16: #{tpu_custom_call.1} parent=0 // pred_region
    _
  $region17: #{tpu_custom_call.1} parent=0 // pred_fallthru
    _
  // Predicated region
  $region18: #{tpu_custom_call.1} parent=0 // pred_check
    _
  $region19: #{tpu_custom_call.1} parent=0 // pred_check_branch
    %20 = sbr.rel (0) target = $region21
  $region20: #{tpu_custom_call.1} parent=0 // pred_region
    _
  $region21: #{tpu_custom_call.1} parent=0 // pred_fallthru
    _
  %p22 = scmp.eq.s32.totalorder 0, 0
  // Predicated region
  $region22: #{tpu_custom_call.1} parent=0 // pred_check
    %p23 = pneg %p22
  $region23: #{tpu_custom_call.1} parent=0 // pred_check_branch
    %25 = sbr.rel (%p23) target = $region25
  $region24: #{tpu_custom_call.1} parent=0 // pred_region
    %vm26 = vcmask 7168
    %27 = vst.msk [vmem:[%s5] sm:$0xff] %vm26, 0.0
  $region25: #{tpu_custom_call.1} parent=0 // pred_fallthru
    _
  %s28 = sld [smem:[#allocation2]]
  %v29 = vld [vmem:[%s0] sm:$0xf]
  %v30 = vld [vmem:[%s1] sm:$0xf]
  %v31 = vld [vmem:[%s1 + $0x4] sm:$0xf]
  %v32 = vld [vmem:[%s1 + $0x8] sm:$0xf]
  %v33 = vld [vmem:[%s1 + $0xc] sm:$0xf]
  %v38 = vunpack.c.l.b16 %v30
  %v39 = vunpack.c.l.b16 %v31
  %v40 = vunpack.c.l.b16 %v32
  %v41 = vunpack.c.l.b16 %v33
  %v42 = vpack.c.b16 %v39, %v38
  %v43 = vpack.c.b16 %v41, %v40
  %vm46 = vcmask 261120
  %v48 = vsel %vm46, %v29, 0
  %50 = vmatprep.subr.bf16.mxu0 0
  %51 = vmatpush1.bf16.msra.mxu0 %v42
  %52 = vmatprep.subr.bf16.mxu0 0
  %53 = vmatpush1.bf16.msra.mxu0 %v43
  %54 = vmatprep.subr.bf16.mxu0 0
  %55 = vmatpush1.bf16.msra.mxu0 0
  %56 = vmatprep.subr.bf16.mxu0 0
  %57 = vmatpush1.bf16.msra.mxu0 0
  %58 = vmatprep.subr.bf16.mxu0 0
  %59 = vmatpush1.bf16.msra.mxu0 0
  %60 = vmatprep.subr.bf16.mxu0 0
  %61 = vmatpush1.bf16.msra.mxu0 0
  %62 = vmatprep.subr.bf16.mxu0 0
  %63 = vmatpush1.bf16.msra.mxu0 0
  %64 = vmatprep.subr.bf16.mxu0 0
  %65 = vmatpush1.bf16.msra.mxu0 0
  %66 = vmatprep.subr.bf16.mxu0 0
  %67 = vmatpush1.bf16.msra.mxu0 0
  %68 = vmatprep.subr.bf16.mxu0 0
  %69 = vmatpush1.bf16.msra.mxu0 0
  %70 = vmatprep.subr.bf16.mxu0 0
  %71 = vmatpush1.bf16.msra.mxu0 0
  %72 = vmatprep.subr.bf16.mxu0 0
  %73 = vmatpush1.bf16.msra.mxu0 0
  %74 = vmatprep.subr.bf16.mxu0 0
  %75 = vmatpush1.bf16.msra.mxu0 0
  %76 = vmatprep.subr.bf16.mxu0 0
  %77 = vmatpush1.bf16.msra.mxu0 0
  %78 = vmatprep.subr.bf16.mxu0 0
  %79 = vmatpush1.bf16.msra.mxu0 0
  %80 = vmatprep.subr.bf16.mxu0 0
  %81 = vmatpush1.bf16.msra.mxu0 0
  %82 = vmatprep.mubr.bf16.mxu0 0
  %83 = vmatmul.mubr.bf16.gmra.mrb[0].mxu0 %v48
  %v84 = vpop.f32.mrb[0].mxu0
  %v85 = vadd.f32 0.0, %v84
  %v86 = vpop.f32.mrb[0].mxu0
  %v87 = vpop.f32.mrb[0].mxu0
  %v88 = vpop.f32.mrb[0].mxu0
  %89 = vdwg.mxu0
  %v90 = vld [vmem:[%s2] sm:$0xff]
  %v91 = vld [vmem:[%s3] sm:$0x1]
  %93 = vset.pattern.permute.xlu0 0
  %94 = vperm.xlu0 %93, %v90
  %v95 = vpop.permute.xlu0 %94
  %v98 = vlaneseq
  %v99 = vshrl.u32 %v98, 7
  %v100 = vsub.s32 0, %v99
  %v101 = vrot.slane %v91, %v100
  %v103 = vadd.f32 %v95, %v101
  %v104 = vmul.f32 %v85, 2.0
  %v105 = vsub.f32 %v103, %v104
  %v106 = vmax.f32 %v105, 0.0
  %s107 = ssub.f32 0.0, %s28
  %v108 = vstv %s107
  %v109 = vmul.f32 %v108, %v106
  %v110 = vpack.c.bf16 %v109, %v109
  %v112 = vmul.bf16 %v110, 1069105081
  %v113 = vpow.bf16.pop %v112
  %v114 = vld [vmem:[%s5] sm:$0xff]
  %v115 = vunpack.c.l.bf16 %v113
  %vm116 = vcmask 64512
  %v117 = vsel %vm116, %v115, 0.0
  %118 = vadd.xlane.f32.xlu0 %v117
  %v119 = vpop.xlane.xlu0 %118
  %v120 = vadd.f32 %v114, %v119
  %vm121 = vcmask 7168
  %122 = vst.msk [vmem:[%s5] sm:$0xff] %vm121, %v120
  // Predicated region
  $region26: #{tpu_custom_call.1} parent=0 // pred_check
    _
  $region27: #{tpu_custom_call.1} parent=0 // pred_check_branch
    %124 = sbr.rel (0) target = $region29
  $region28: #{tpu_custom_call.1} parent=0 // pred_region
    _
  $region29: #{tpu_custom_call.1} parent=0 // pred_fallthru
    _
  // Predicated region
  $region30: #{tpu_custom_call.1} parent=0 // pred_check
    _
  $region31: #{tpu_custom_call.1} parent=0 // pred_check_branch
    %126 = sbr.rel (0) target = $region33
  $region32: #{tpu_custom_call.1} parent=0 // pred_region
    _
  $region33: #{tpu_custom_call.1} parent=0 // pred_fallthru
    _

</llo_original>
